<compile_context>
chip_gen: v5e
topology: v5e:2x2
jax: 0.10.0
libtpu: 0.0.40
codegen_flags: <defaults>
</compile_context>

<pallas_src>
import jax
import jax.numpy as jnp
from jax.experimental import pallas as pl
from jax.experimental.pallas import tpu as pltpu

UNITS = 32
INPUT = 12
OUTPUT = 3
HIDDEN_LAYERS = 3
NUM_LAYERS = HIDDEN_LAYERS + 2          # input layer + 3 hidden + output layer

COMPUTE_DTYPE = jnp.bfloat16            # MXU operand dtype (f32 accumulation)


def _mlp_kernel(x_ref, w_ref, b_ref, o_ref):
    # x_ref: (TB, INPUT) f32          w_ref: (L, UNITS, UNITS) bf16 (zero-padded)
    # b_ref: (L, 1, UNITS) f32        o_ref: (TB, OUTPUT) f32
    x = x_ref[...].astype(COMPUTE_DTYPE)                    # one VPU cast per tile

    # Layer 0: only the first INPUT rows of the padded weight are real, so we
    # slice them and keep K=12 instead of padding x out in HBM.
    z = jnp.dot(x, w_ref[0, :INPUT, :], preferred_element_type=jnp.float32)
    h = jnp.maximum(z + b_ref[0], 0.0).astype(COMPUTE_DTYPE)

    # Hidden layers (unrolled): (TB, 32) @ (32, 32) + bias -> ReLU, bf16 back
    # into the MXU, f32 accumulate.
    for l in range(1, NUM_LAYERS - 1):
        z = jnp.dot(h, w_ref[l], preferred_element_type=jnp.float32)
        h = jnp.maximum(z + b_ref[l], 0.0).astype(COMPUTE_DTYPE)

    # Output layer: raw logits (no activation); zero-padded columns sliced off.
    z = jnp.dot(h, w_ref[NUM_LAYERS - 1], preferred_element_type=jnp.float32)
    logits = z + b_ref[NUM_LAYERS - 1]
    o_ref[...] = logits[:, :OUTPUT].astype(o_ref.dtype)


def mlp_forward(x, w_all, b_all, *, tb=1024):
    """x: (B, ...) f32 (flattened to (B, INPUT)); w_all: bf16[L,32,32]; b_all: f32[L,1,32]."""
    x = x.reshape(x.shape[0], -1)                 # nn.Flatten (identity for 2-D)
    assert x.shape[1] == INPUT
    batch = x.shape[0]

    # Batch tile: big to amortize per-step overhead, MXU/sublane aligned.
    tb = min(tb, batch)
    if tb < batch:
        tb = max(8, (tb // 8) * 8)                # keep the tile sublane-aligned
    grid = (pl.cdiv(batch, tb),)

    return pl.pallas_call(
        _mlp_kernel,
        out_shape=jax.ShapeDtypeStruct((batch, OUTPUT), jnp.float32),
        grid=grid,
        in_specs=[
            # Streamed activations: new block per grid step.
            pl.BlockSpec((tb, INPUT), lambda i: (i, 0)),
            # Packed parameters: constant index_map => fetched once, VMEM-resident.
            pl.BlockSpec((NUM_LAYERS, UNITS, UNITS), lambda i: (0, 0, 0)),
            pl.BlockSpec((NUM_LAYERS, 1, UNITS), lambda i: (0, 0, 0)),
        ],
        out_specs=pl.BlockSpec((tb, OUTPUT), lambda i: (i, 0)),
        compiler_params=pltpu.CompilerParams(
            dimension_semantics=("parallel",)),   # use both TCs on v7x
    )(x, w_all, b_all)


def init_params(key):
    """Deterministic Xavier-normal weights / zero biases matching the PyTorch module."""
    dims = [INPUT] + [UNITS] * (HIDDEN_LAYERS + 1) + [OUTPUT]
    params = []
    for i in range(len(dims) - 1):
        key, wkey = jax.random.split(key)
        fan_in, fan_out = dims[i], dims[i + 1]
        std = (2.0 / (fan_in + fan_out)) ** 0.5
        w = jax.random.normal(wkey, (fan_in, fan_out), dtype=jnp.float32) * std
        b = jnp.zeros((1, fan_out), dtype=jnp.float32)
        params.append((w, b))
    return params


def pack_params(params, compute_dtype=COMPUTE_DTYPE):
    """Stack the 5 (W, b) pairs into one zero-padded weight tensor + one bias tensor."""
    w_all = jnp.zeros((NUM_LAYERS, UNITS, UNITS), dtype=compute_dtype)
    b_all = jnp.zeros((NUM_LAYERS, 1, UNITS), dtype=jnp.float32)
    for l, (w, b) in enumerate(params):
        k, n = w.shape
        w_all = w_all.at[l, :k, :n].set(w.astype(compute_dtype))
        b_all = b_all.at[l, :, :n].set(b)
    return w_all, b_all


def reference_forward(x, w_all, b_all):
    """Pure-JAX reference mirroring the kernel numerics (bf16 operands, f32 accumulation)."""
    x = x.reshape(x.shape[0], -1)
    h = x.astype(COMPUTE_DTYPE)
    z = None
    for l in range(NUM_LAYERS):
        w = w_all[l, :INPUT, :] if l == 0 else w_all[l]
        z = jnp.dot(h, w, preferred_element_type=jnp.float32) + b_all[l]
        if l < NUM_LAYERS - 1:
            h = jnp.maximum(z, 0.0).astype(COMPUTE_DTYPE)
    return z[:, :OUTPUT]


if __name__ == "__main__":
    key = jax.random.PRNGKey(0)
    pkey, xkey, x2key = jax.random.split(key, 3)

    params = init_params(pkey)
    w_all, b_all = pack_params(params)

    # Small deterministic input consistent with the module (batch=2, 12 features;
    # nn.Flatten is an identity for 2-D inputs).
    x = jax.random.normal(xkey, (2, INPUT), dtype=jnp.float32)
    logits = jax.block_until_ready(mlp_forward(x, w_all, b_all))
    ref = reference_forward(x, w_all, b_all)
    assert logits.shape == (2, OUTPUT)
    assert jnp.allclose(logits, ref, atol=1e-4, rtol=1e-4)

    # Exercise the batch grid: multiple tiles plus a ragged final tile.
    x2 = jax.random.normal(x2key, (300, INPUT), dtype=jnp.float32)
    logits2 = jax.block_until_ready(mlp_forward(x2, w_all, b_all, tb=128))
    ref2 = reference_forward(x2, w_all, b_all)
    assert logits2.shape == (300, OUTPUT)
    assert jnp.allclose(logits2, ref2, atol=1e-4, rtol=1e-4)

    print("KERNEL_OK")
</pallas_src>

<mosaic_0001>
module attributes {stable_mosaic.version = 11 : i64} {
  func.func @_mlp_kernel(%arg0: i32, %arg1: memref<2x12xf32, #tpu.memory_space<vmem>>, %arg2: memref<5x32x32xbf16, #tpu.memory_space<vmem>>, %arg3: memref<5x1x32xf32, #tpu.memory_space<vmem>>, %arg4: memref<2x3xf32, #tpu.memory_space<vmem>>) attributes {dimension_semantics = [#tpu.dimension_semantics<parallel>], iteration_bounds = array<i64: 1>, scalar_prefetch = 0 : i64, scratch_operands = 0 : i64, tpu.core_type = #tpu.core_type<tc>, window_params = [{transform_indices = @transform_0, window_bounds = array<i64: 2, 12>}, {pipeline_mode = #tpu.pipeline_mode<synchronous>, transform_indices = @transform_1, window_bounds = array<i64: 5, 32, 32>}, {pipeline_mode = #tpu.pipeline_mode<synchronous>, transform_indices = @transform_2, window_bounds = array<i64: 5, 1, 32>}, {transform_indices = @transform_3, window_bounds = array<i64: 2, 3>}]} {
    %c0 = arith.constant 0 : index
    %c0_0 = arith.constant 0 : index
    %0 = vector.load %arg1[%c0, %c0_0] : memref<2x12xf32, #tpu.memory_space<vmem>>, vector<2x12xf32>
    %1 = arith.truncf %0 : vector<2x12xf32> to vector<2x12xbf16>
    %c0_1 = arith.constant 0 : index
    %c0_2 = arith.constant 0 : index
    %c0_3 = arith.constant 0 : index
    %2 = vector.load %arg2[%c0_1, %c0_2, %c0_3] : memref<5x32x32xbf16, #tpu.memory_space<vmem>>, vector<1x12x32xbf16>
    %3 = vector.shape_cast %2 : vector<1x12x32xbf16> to vector<12x32xbf16>
    %cst = arith.constant dense<0.000000e+00> : vector<2x32xf32>
    %4 = tpu.matmul %1, %3, %cst {dimension_numbers = #tpu.dot_dimension_numbers<[1], [0], [0], [1], [0, 0, 1, 1], [], []>} : vector<2x12xbf16>, vector<12x32xbf16>, vector<2x32xf32> -> vector<2x32xf32>
    %c0_4 = arith.constant 0 : index
    %c0_5 = arith.constant 0 : index
    %c0_6 = arith.constant 0 : index
    %5 = vector.load %arg3[%c0_4, %c0_5, %c0_6] : memref<5x1x32xf32, #tpu.memory_space<vmem>>, vector<1x1x32xf32>
    %6 = vector.shape_cast %5 : vector<1x1x32xf32> to vector<1x32xf32>
    %7 = vector.broadcast %6 : vector<1x32xf32> to vector<2x32xf32>
    %8 = arith.addf %4, %7 : vector<2x32xf32>
    %cst_7 = arith.constant 0.000000e+00 : f32
    %9 = vector.broadcast %cst_7 : f32 to vector<2x32xf32>
    %10 = arith.maximumf %8, %9 : vector<2x32xf32>
    %11 = arith.truncf %10 : vector<2x32xf32> to vector<2x32xbf16>
    %c1 = arith.constant 1 : index
    %c0_8 = arith.constant 0 : index
    %c0_9 = arith.constant 0 : index
    %12 = vector.load %arg2[%c1, %c0_8, %c0_9] : memref<5x32x32xbf16, #tpu.memory_space<vmem>>, vector<1x32x32xbf16>
    %13 = vector.shape_cast %12 : vector<1x32x32xbf16> to vector<32x32xbf16>
    %cst_10 = arith.constant dense<0.000000e+00> : vector<2x32xf32>
    %14 = tpu.matmul %11, %13, %cst_10 {dimension_numbers = #tpu.dot_dimension_numbers<[1], [0], [0], [1], [0, 0, 1, 1], [], []>} : vector<2x32xbf16>, vector<32x32xbf16>, vector<2x32xf32> -> vector<2x32xf32>
    %c1_11 = arith.constant 1 : index
    %c0_12 = arith.constant 0 : index
    %c0_13 = arith.constant 0 : index
    %15 = vector.load %arg3[%c1_11, %c0_12, %c0_13] : memref<5x1x32xf32, #tpu.memory_space<vmem>>, vector<1x1x32xf32>
    %16 = vector.shape_cast %15 : vector<1x1x32xf32> to vector<1x32xf32>
    %17 = vector.broadcast %16 : vector<1x32xf32> to vector<2x32xf32>
    %18 = arith.addf %14, %17 : vector<2x32xf32>
    %cst_14 = arith.constant 0.000000e+00 : f32
    %19 = vector.broadcast %cst_14 : f32 to vector<2x32xf32>
    %20 = arith.maximumf %18, %19 : vector<2x32xf32>
    %21 = arith.truncf %20 : vector<2x32xf32> to vector<2x32xbf16>
    %c2 = arith.constant 2 : index
    %c0_15 = arith.constant 0 : index
    %c0_16 = arith.constant 0 : index
    %22 = vector.load %arg2[%c2, %c0_15, %c0_16] : memref<5x32x32xbf16, #tpu.memory_space<vmem>>, vector<1x32x32xbf16>
    %23 = vector.shape_cast %22 : vector<1x32x32xbf16> to vector<32x32xbf16>
    %cst_17 = arith.constant dense<0.000000e+00> : vector<2x32xf32>
    %24 = tpu.matmul %21, %23, %cst_17 {dimension_numbers = #tpu.dot_dimension_numbers<[1], [0], [0], [1], [0, 0, 1, 1], [], []>} : vector<2x32xbf16>, vector<32x32xbf16>, vector<2x32xf32> -> vector<2x32xf32>
    %c2_18 = arith.constant 2 : index
    %c0_19 = arith.constant 0 : index
    %c0_20 = arith.constant 0 : index
    %25 = vector.load %arg3[%c2_18, %c0_19, %c0_20] : memref<5x1x32xf32, #tpu.memory_space<vmem>>, vector<1x1x32xf32>
    %26 = vector.shape_cast %25 : vector<1x1x32xf32> to vector<1x32xf32>
    %27 = vector.broadcast %26 : vector<1x32xf32> to vector<2x32xf32>
    %28 = arith.addf %24, %27 : vector<2x32xf32>
    %cst_21 = arith.constant 0.000000e+00 : f32
    %29 = vector.broadcast %cst_21 : f32 to vector<2x32xf32>
    %30 = arith.maximumf %28, %29 : vector<2x32xf32>
    %31 = arith.truncf %30 : vector<2x32xf32> to vector<2x32xbf16>
    %c3 = arith.constant 3 : index
    %c0_22 = arith.constant 0 : index
    %c0_23 = arith.constant 0 : index
    %32 = vector.load %arg2[%c3, %c0_22, %c0_23] : memref<5x32x32xbf16, #tpu.memory_space<vmem>>, vector<1x32x32xbf16>
    %33 = vector.shape_cast %32 : vector<1x32x32xbf16> to vector<32x32xbf16>
    %cst_24 = arith.constant dense<0.000000e+00> : vector<2x32xf32>
    %34 = tpu.matmul %31, %33, %cst_24 {dimension_numbers = #tpu.dot_dimension_numbers<[1], [0], [0], [1], [0, 0, 1, 1], [], []>} : vector<2x32xbf16>, vector<32x32xbf16>, vector<2x32xf32> -> vector<2x32xf32>
    %c3_25 = arith.constant 3 : index
    %c0_26 = arith.constant 0 : index
    %c0_27 = arith.constant 0 : index
    %35 = vector.load %arg3[%c3_25, %c0_26, %c0_27] : memref<5x1x32xf32, #tpu.memory_space<vmem>>, vector<1x1x32xf32>
    %36 = vector.shape_cast %35 : vector<1x1x32xf32> to vector<1x32xf32>
    %37 = vector.broadcast %36 : vector<1x32xf32> to vector<2x32xf32>
    %38 = arith.addf %34, %37 : vector<2x32xf32>
    %cst_28 = arith.constant 0.000000e+00 : f32
    %39 = vector.broadcast %cst_28 : f32 to vector<2x32xf32>
    %40 = arith.maximumf %38, %39 : vector<2x32xf32>
    %41 = arith.truncf %40 : vector<2x32xf32> to vector<2x32xbf16>
    %c4 = arith.constant 4 : index
    %c0_29 = arith.constant 0 : index
    %c0_30 = arith.constant 0 : index
    %42 = vector.load %arg2[%c4, %c0_29, %c0_30] : memref<5x32x32xbf16, #tpu.memory_space<vmem>>, vector<1x32x32xbf16>
    %43 = vector.shape_cast %42 : vector<1x32x32xbf16> to vector<32x32xbf16>
    %cst_31 = arith.constant dense<0.000000e+00> : vector<2x32xf32>
    %44 = tpu.matmul %41, %43, %cst_31 {dimension_numbers = #tpu.dot_dimension_numbers<[1], [0], [0], [1], [0, 0, 1, 1], [], []>} : vector<2x32xbf16>, vector<32x32xbf16>, vector<2x32xf32> -> vector<2x32xf32>
    %c4_32 = arith.constant 4 : index
    %c0_33 = arith.constant 0 : index
    %c0_34 = arith.constant 0 : index
    %45 = vector.load %arg3[%c4_32, %c0_33, %c0_34] : memref<5x1x32xf32, #tpu.memory_space<vmem>>, vector<1x1x32xf32>
    %46 = vector.shape_cast %45 : vector<1x1x32xf32> to vector<1x32xf32>
    %47 = vector.broadcast %46 : vector<1x32xf32> to vector<2x32xf32>
    %48 = arith.addf %44, %47 : vector<2x32xf32>
    %49 = vector.extract_strided_slice %48 {offsets = [0, 0], sizes = [2, 3], strides = [1, 1]} : vector<2x32xf32> to vector<2x3xf32>
    %c0_35 = arith.constant 0 : index
    %c0_36 = arith.constant 0 : index
    %50 = vector.load %arg4[%c0_35, %c0_36] : memref<2x3xf32, #tpu.memory_space<vmem>>, vector<2x3xf32>
    tpu.vector_store %arg4[%c0_35, %c0_36], %49 {strides = array<i32>} : memref<2x3xf32, #tpu.memory_space<vmem>>, vector<2x3xf32>,
    return
  }
  func.func @transform_0(%arg0: i32) -> (i32, i32) {
    %c0_i32 = arith.constant 0 : i32
    %c0_i32_0 = arith.constant 0 : i32
    return %arg0, %c0_i32 : i32, i32
  }
  func.func @transform_1(%arg0: i32) -> (i32, i32, i32) {
    %c0_i32 = arith.constant 0 : i32
    %c0_i32_0 = arith.constant 0 : i32
    %c0_i32_1 = arith.constant 0 : i32
    %c0_i32_2 = arith.constant 0 : i32
    return %c0_i32, %c0_i32_0, %c0_i32_1 : i32, i32, i32
  }
  func.func @transform_2(%arg0: i32) -> (i32, i32, i32) {
    %c0_i32 = arith.constant 0 : i32
    %c0_i32_0 = arith.constant 0 : i32
    %c0_i32_1 = arith.constant 0 : i32
    %c0_i32_2 = arith.constant 0 : i32
    return %c0_i32, %c0_i32_0, %c0_i32_1 : i32, i32, i32
  }
  func.func @transform_3(%arg0: i32) -> (i32, i32) {
    %c0_i32 = arith.constant 0 : i32
    %c0_i32_0 = arith.constant 0 : i32
    return %arg0, %c0_i32 : i32, i32
  }
}

</mosaic_0001>

<llo_original>
// kernel: tpu_custom_call.1
$region0: #{tpu_custom_call.1}
  #allocation0 [shape = 'u32[]', space=smem, size = 0x4, offset = 0x4, fixed_abs, tag = 'smem constant byte address 0x4 - core index']
  #allocation1 [shape = 'u32[72,128]{1,0:T(1,128)}', space=vmem, size = 0x9000, scoped, tag = 'internal scratch']
  %s0 = inlined_call_operand.hbm [shape: f32[2,12], index: 0, kind: input, shape index: {}]
  %s1 = inlined_call_operand.hbm [shape: bf16[5,32,32], index: 1, kind: input, shape index: {}]
  %s2 = inlined_call_operand.hbm [shape: f32[5,1,32], index: 2, kind: input, shape index: {}]
  %s3 = inlined_call_operand.hbm [shape: f32[2,3], index: 3, kind: output, shape index: {}]
  %s4 = sld [smem:[#allocation0]]
  $region34: #{tpu_custom_call.1} parent=0
    _
  %s6 = ssub.s32 1, %s4
  %s7 = scalar_select 0, %s6, %s4
  $region1: #{tpu_custom_call.1} parent=0
    #allocation2 [shape = 'u8[1024]{0}', space=vmem, size = 0x400, scoped, tag = 'input window, operand 0, single buffered']
    #allocation3 [shape = 's32[1]{0}', space=sflag, size = 0x4, scoped, tag = 'scoped memory for tpu_custom_call.1']
    #allocation4 [shape = 's32[1]{0}', space=sflag, size = 0x4, scoped, tag = 'scoped memory for tpu_custom_call.1']
    #allocation5 [shape = 'u8[40960]{0}', space=vmem, size = 0xa000, scoped, tag = 'input window, operand 1, single buffered']
    #allocation6 [shape = 's32[1]{0}', space=sflag, size = 0x4, scoped, tag = 'scoped memory for tpu_custom_call.1']
    #allocation7 [shape = 'u8[2560]{0}', space=vmem, size = 0xc00, scoped, tag = 'input window, operand 2, single buffered']
    #allocation8 [shape = 'u8[1024]{0}', space=vmem, size = 0x400, scoped, tag = 'output window, operand 0, single buffered']
    %8 = vsyncpa [#allocation3], 0
    %9 = vsyncpa [#allocation6], 0
    %10 = vsyncpa [#allocation4], 0
    // Predicated region
    $region2: #{tpu_custom_call.1} parent=1 // pred_check
      _
    $region3: #{tpu_custom_call.1} parent=1 // pred_check_branch
      %12 = sbr.rel (0) target = $region5
    $region4: #{tpu_custom_call.1} parent=1 // pred_region
      %14 = vsyncadd [#allocation3], 0
      %s16 = sshll.u32 %s0, 4
      %s17 = int_to_ptr.hbm [resolvable:$true] %s16
      %s18 = sshll.u32 [#allocation2], 4
      %s19 = int_to_ptr.vmem [resolvable:$true] %s18
      %21 = dma.hbm_to_vmem [thread:$0]  %s17, 32, %s19, [#allocation3]
    $region5: #{tpu_custom_call.1} parent=1 // pred_fallthru
      _
    // Predicated region
    $region6: #{tpu_custom_call.1} parent=1 // pred_check
      _
    $region7: #{tpu_custom_call.1} parent=1 // pred_check_branch
      %23 = sbr.rel (0) target = $region9
    $region8: #{tpu_custom_call.1} parent=1 // pred_region
      %25 = vsyncadd [#allocation6], 0
      %s26 = sshll.u32 %s1, 4
      %s27 = int_to_ptr.hbm [resolvable:$true] %s26
      %s28 = sshll.u32 [#allocation5], 4
      %s29 = int_to_ptr.vmem [resolvable:$true] %s28
      %34 = dma.hbm_to_vmem [thread:$0]  %s27, 1280, %s29, [#allocation6], 64, 64, 4
    $region9: #{tpu_custom_call.1} parent=1 // pred_fallthru
      _
    // Predicated region
    $region10: #{tpu_custom_call.1} parent=1 // pred_check
      _
    $region11: #{tpu_custom_call.1} parent=1 // pred_check_branch
      %36 = sbr.rel (0) target = $region13
    $region12: #{tpu_custom_call.1} parent=1 // pred_region
      %38 = vsyncadd [#allocation6], 0
      %s39 = sshll.u32 %s2, 4
      %s40 = int_to_ptr.hbm [resolvable:$true] %s39
      %s41 = sshll.u32 [#allocation7], 4
      %s42 = int_to_ptr.vmem [resolvable:$true] %s41
      %47 = dma.hbm_to_vmem [thread:$0]  %s40, 80, %s42, [#allocation6], 16, 16, 1
    $region13: #{tpu_custom_call.1} parent=1 // pred_fallthru
      _
    // Predicated region
    $region14: #{tpu_custom_call.1} parent=1 // pred_check
      _
    $region15: #{tpu_custom_call.1} parent=1 // pred_check_branch
      %49 = sbr.rel (0) target = $region17
    $region16: #{tpu_custom_call.1} parent=1 // pred_region
      %51 = dma.done [#allocation3], 32
    $region17: #{tpu_custom_call.1} parent=1 // pred_fallthru
      _
    // Predicated region
    $region18: #{tpu_custom_call.1} parent=1 // pred_check
      _
    $region19: #{tpu_custom_call.1} parent=1 // pred_check_branch
      %53 = sbr.rel (0) target = $region21
    $region20: #{tpu_custom_call.1} parent=1 // pred_region
      %55 = dma.done [#allocation6], 1280
    $region21: #{tpu_custom_call.1} parent=1 // pred_fallthru
      _
    // Predicated region
    $region22: #{tpu_custom_call.1} parent=1 // pred_check
      _
    $region23: #{tpu_custom_call.1} parent=1 // pred_check_branch
      %57 = sbr.rel (0) target = $region25
    $region24: #{tpu_custom_call.1} parent=1 // pred_region
      %59 = dma.done [#allocation6], 80
    $region25: #{tpu_custom_call.1} parent=1 // pred_fallthru
      _
    %v61 = vld [vmem:[#allocation2] sm:$0x3]
    %v62 = vpack.c.bf16 %v61, %v61
    %v63 = vld [vmem:[#allocation5] sm:$0xf]
    %v64 = vld [vmem:[#allocation5 + $0x4] sm:$0x3]
    %v65 = vld [vmem:[#allocation7] sm:$0x1]
    %v67 = vperm.slane %v65, 0
    %v71 = vunpack.c.l.b16 %v63
    %v72 = vunpack.c.l.b16 %v64
    %v73 = vpack.c.b16 %v72, %v71
    %vm74 = vcmask 97280
    %v76 = vsel %vm74, %v62, 0
    %vm78 = vcmask 1045504
    %v80 = vsel %vm78, %v73, 0
    %82 = vmatpush.bf16.msra.mxu0 0
    %83 = vmatpush.bf16.msra.mxu0 0
    %84 = vmatpush.bf16.msra.mxu0 0
    %85 = vmatpush.bf16.msra.mxu0 0
    %86 = vmatpush.bf16.msra.mxu0 0
    %87 = vmatpush.bf16.msra.mxu0 0
    %88 = vmatpush.bf16.msra.mxu0 0
    %89 = vmatpush.bf16.msra.mxu0 %v80
    %90 = vmatmul.bf16.gmra.mxu0 %v76
    %v91 = vpop.f32.mrf.mxu0
    %v92 = vadd.f32 %v67, %v91
    %v93 = vpop.f32.mrf.mxu0
    %94 = vdwg.mxu0
    %v95 = vmax.f32 %v92, 0.0
    %v96 = vpack.c.bf16 %v95, %v95
    %s97 = scalar_lea.vmem [#allocation5], 16
    %v98 = vld [vmem:[%s97] sm:$0xf]
    %v99 = vld [vmem:[%s97 + $0x4] sm:$0xf]
    %v100 = vld [vmem:[%s97 + $0x8] sm:$0xf]
    %v101 = vld [vmem:[%s97 + $0xc] sm:$0xf]
    %s102 = scalar_lea.vmem [#allocation7], 1
    %v103 = vld [vmem:[%s102] sm:$0x1]
    %v105 = vperm.slane %v103, 0
    %v111 = vunpack.c.l.b16 %v98
    %v112 = vunpack.c.l.b16 %v99
    %v113 = vunpack.c.l.b16 %v100
    %v114 = vunpack.c.l.b16 %v101
    %v115 = vpack.c.b16 %v112, %v111
    %v116 = vpack.c.b16 %v114, %v113
    %vm119 = vcmask 261120
    %v121 = vsel %vm119, %v96, 0
    %123 = vmatpush.bf16.msra.mxu0 0
    %124 = vmatpush.bf16.msra.mxu0 0
    %125 = vmatpush.bf16.msra.mxu0 0
    %126 = vmatpush.bf16.msra.mxu0 0
    %127 = vmatpush.bf16.msra.mxu0 0
    %128 = vmatpush.bf16.msra.mxu0 0
    %129 = vmatpush.bf16.msra.mxu0 %v116
    %130 = vmatpush.bf16.msra.mxu0 %v115
    %131 = vmatmul.bf16.gmra.mxu0 %v121
    %v132 = vpop.f32.mrf.mxu0
    %v133 = vadd.f32 %v105, %v132
    %v134 = vpop.f32.mrf.mxu0
    %135 = vdwg.mxu0
    %v136 = vmax.f32 %v133, 0.0
    %v137 = vpack.c.bf16 %v136, %v136
    %s138 = scalar_lea.vmem [#allocation5], 32
    %v139 = vld [vmem:[%s138] sm:$0xf]
    %v140 = vld [vmem:[%s138 + $0x4] sm:$0xf]
    %v141 = vld [vmem:[%s138 + $0x8] sm:$0xf]
    %v142 = vld [vmem:[%s138 + $0xc] sm:$0xf]
    %s143 = scalar_lea.vmem [#allocation7], 2
    %v144 = vld [vmem:[%s143] sm:$0x1]
    %v146 = vperm.slane %v144, 0
    %v152 = vunpack.c.l.b16 %v139
    %v153 = vunpack.c.l.b16 %v140
    %v154 = vunpack.c.l.b16 %v141
    %v155 = vunpack.c.l.b16 %v142
    %v156 = vpack.c.b16 %v153, %v152
    %v157 = vpack.c.b16 %v155, %v154
    %v161 = vsel %vm119, %v137, 0
    %163 = vmatpush.bf16.msra.mxu0 0
    %164 = vmatpush.bf16.msra.mxu0 0
    %165 = vmatpush.bf16.msra.mxu0 0
    %166 = vmatpush.bf16.msra.mxu0 0
    %167 = vmatpush.bf16.msra.mxu0 0
    %168 = vmatpush.bf16.msra.mxu0 0
    %169 = vmatpush.bf16.msra.mxu0 %v157
    %170 = vmatpush.bf16.msra.mxu0 %v156
    %171 = vmatmul.bf16.gmra.mxu0 %v161
    %v172 = vpop.f32.mrf.mxu0
    %v173 = vadd.f32 %v146, %v172
    %v174 = vpop.f32.mrf.mxu0
    %175 = vdwg.mxu0
    %v176 = vmax.f32 %v173, 0.0
    %v177 = vpack.c.bf16 %v176, %v176
    %s178 = scalar_lea.vmem [#allocation5], 48
    %v179 = vld [vmem:[%s178] sm:$0xf]
    %v180 = vld [vmem:[%s178 + $0x4] sm:$0xf]
    %v181 = vld [vmem:[%s178 + $0x8] sm:$0xf]
    %v182 = vld [vmem:[%s178 + $0xc] sm:$0xf]
    %s183 = scalar_lea.vmem [#allocation7], 3
    %v184 = vld [vmem:[%s183] sm:$0x1]
    %v186 = vperm.slane %v184, 0
    %v192 = vunpack.c.l.b16 %v179
    %v193 = vunpack.c.l.b16 %v180
    %v194 = vunpack.c.l.b16 %v181
    %v195 = vunpack.c.l.b16 %v182
    %v196 = vpack.c.b16 %v193, %v192
    %v197 = vpack.c.b16 %v195, %v194
    %v201 = vsel %vm119, %v177, 0
    %203 = vmatpush.bf16.msra.mxu0 0
    %204 = vmatpush.bf16.msra.mxu0 0
    %205 = vmatpush.bf16.msra.mxu0 0
    %206 = vmatpush.bf16.msra.mxu0 0
    %207 = vmatpush.bf16.msra.mxu0 0
    %208 = vmatpush.bf16.msra.mxu0 0
    %209 = vmatpush.bf16.msra.mxu0 %v197
    %210 = vmatpush.bf16.msra.mxu0 %v196
    %211 = vmatmul.bf16.gmra.mxu0 %v201
    %v212 = vpop.f32.mrf.mxu0
    %v213 = vadd.f32 %v186, %v212
    %v214 = vpop.f32.mrf.mxu0
    %215 = vdwg.mxu0
    %v216 = vmax.f32 %v213, 0.0
    %v217 = vpack.c.bf16 %v216, %v216
    %s218 = scalar_lea.vmem [#allocation5], 64
    %v219 = vld [vmem:[%s218] sm:$0xf]
    %v220 = vld [vmem:[%s218 + $0x4] sm:$0xf]
    %v221 = vld [vmem:[%s218 + $0x8] sm:$0xf]
    %v222 = vld [vmem:[%s218 + $0xc] sm:$0xf]
    %s223 = scalar_lea.vmem [#allocation7], 4
    %v224 = vld [vmem:[%s223] sm:$0x1]
    %v226 = vperm.slane %v224, 0
    %v232 = vunpack.c.l.b16 %v219
    %v233 = vunpack.c.l.b16 %v220
    %v234 = vunpack.c.l.b16 %v221
    %v235 = vunpack.c.l.b16 %v222
    %v236 = vpack.c.b16 %v233, %v232
    %v237 = vpack.c.b16 %v235, %v234
    %v241 = vsel %vm119, %v217, 0
    %243 = vmatpush.bf16.msra.mxu0 0
    %244 = vmatpush.bf16.msra.mxu0 0
    %245 = vmatpush.bf16.msra.mxu0 0
    %246 = vmatpush.bf16.msra.mxu0 0
    %247 = vmatpush.bf16.msra.mxu0 0
    %248 = vmatpush.bf16.msra.mxu0 0
    %249 = vmatpush.bf16.msra.mxu0 %v237
    %250 = vmatpush.bf16.msra.mxu0 %v236
    %251 = vmatmul.bf16.gmra.mxu0 %v241
    %v252 = vpop.f32.mrf.mxu0
    %v253 = vadd.f32 %v226, %v252
    %v254 = vpop.f32.mrf.mxu0
    %255 = vdwg.mxu0
    %vm256 = vcmask 17408
    %257 = vst.msk [vmem:[#allocation8] sm:$0x3] %vm256, %v253
    // Predicated region
    $region26: #{tpu_custom_call.1} parent=1 // pred_check
      _
    $region27: #{tpu_custom_call.1} parent=1 // pred_check_branch
      %259 = sbr.rel (0) target = $region29
    $region28: #{tpu_custom_call.1} parent=1 // pred_region
      %261 = vsyncadd [#allocation4], 0
      %s263 = sshll.u32 [#allocation8], 4
      %s264 = int_to_ptr.vmem [resolvable:$true] %s263
      %s265 = sshll.u32 %s3, 4
      %s266 = int_to_ptr.hbm [resolvable:$true] %s265
      %268 = dma.vmem_to_hbm [thread:$0]  %s264, 32, %s266, [#allocation4]
    $region29: #{tpu_custom_call.1} parent=1 // pred_fallthru
      _
    // Predicated region
    $region30: #{tpu_custom_call.1} parent=1 // pred_check
      _
    $region31: #{tpu_custom_call.1} parent=1 // pred_check_branch
      %270 = sbr.rel (0) target = $region33
    $region32: #{tpu_custom_call.1} parent=1 // pred_region
      %272 = dma.done [#allocation4], 32
    $region33: #{tpu_custom_call.1} parent=1 // pred_fallthru
      _
    %273 = vsyncpa [#allocation3], 1
    %274 = vsyncpa [#allocation6], 1
    %275 = vsyncpa [#allocation4], 1

</llo_original>
